<compile_context>
chip_gen: v6e
topology: v6e:2x2x1
jax: 0.10.0
libtpu: 0.0.40
codegen_flags: <defaults>
</compile_context>

<pallas_src>
import functools

import jax
import jax.numpy as jnp
from jax.experimental import pallas as pl
from jax.experimental.pallas import tpu as pltpu


def _lstm_gen_kernel(x_ref, we_ref, be_ref, wih_ref, bg_ref, o_ref, *, h_out):
    """One row-tile of the fused embedding + single-step LSTM.

    x_ref:   (block_rows, input_dim)
    we_ref:  (input_dim, hidden)        -- embedding weight, pre-transposed
    be_ref:  (1, hidden)                -- embedding bias
    wih_ref: (hidden, 4*h_out)          -- LSTM input weight, pre-transposed
    bg_ref:  (1, 4*h_out)               -- b_ih + b_hh (fused in wrapper)
    o_ref:   (block_rows, h_out)
    """
    x = x_ref[...].astype(jnp.float32)

    # Embedding: x @ W_e^T + b_e   (MXU)
    emb = jnp.dot(x, we_ref[...].astype(jnp.float32),
                  preferred_element_type=jnp.float32)
    emb = emb + be_ref[...].astype(jnp.float32)

    # Single LSTM step with zero initial state: gates = emb @ W_ih^T + (b_ih + b_hh)
    # (h_{-1} = 0, so the W_hh term is exactly zero and is elided.)
    gates = jnp.dot(emb, wih_ref[...].astype(jnp.float32),
                    preferred_element_type=jnp.float32)
    gates = gates + bg_ref[...].astype(jnp.float32)

    # PyTorch gate order: input, forget, cell, output.
    i_g = jax.nn.sigmoid(gates[:, 0 * h_out:1 * h_out])
    # forget gate multiplies c_{-1} = 0 -> never reaches the output; skipped.
    g_g = jnp.tanh(gates[:, 2 * h_out:3 * h_out])
    o_g = jax.nn.sigmoid(gates[:, 3 * h_out:4 * h_out])

    c = i_g * g_g                 # c0 = 0  =>  c = i * g
    h = o_g * jnp.tanh(c)         # LSTM output for the single time step
    o_ref[...] = h.astype(o_ref.dtype)


def _choose_block_rows(rows8, in_dim, hidden, gates_dim, h_out,
                       max_block_rows=512):
    """Pick an 8-aligned row block sized from a conservative VMEM budget.

    Budget ~8 MiB keeps in/out double-buffered tiles + resident weights well
    inside the 32 MiB default scoped VMEM (and v7x's 64 MiB physical VMEM).
    """
    bytes_per_row = 4 * (2 * (in_dim + h_out)   # in/out tiles, double-buffered
                         + hidden + gates_dim)  # in-kernel intermediates
    budget = 8 * 1024 * 1024
    br = min(max_block_rows, max(8, budget // max(bytes_per_row, 1)))
    br = (br // 8) * 8
    br = min(br, rows8)
    # Keep at least 2 grid steps when possible so the 'parallel' row axis can be
    # sharded across v7x's two TensorCores (on v5e/v6e the extra step costs only
    # ~0.35 us).
    if br == rows8 and rows8 >= 16:
        br = max(8, ((rows8 // 2) + 7) // 8 * 8)
    return br


def lstm_generator_forward(ipts, w_emb, b_emb, w_ih, w_hh, b_ih, b_hh):
    """Forward pass matching PyTorch LSTMGenerator.forward.

    ipts:  (N, input_dim)
    w_emb: (hidden, input_dim), b_emb: (hidden,)
    w_ih:  (4*output_dim, hidden), w_hh: (4*output_dim, output_dim)
    b_ih, b_hh: (4*output_dim,)
    returns (1, N, output_dim)   -- same layout as the PyTorch module.
    """
    del w_hh  # zero initial hidden state => recurrent contribution is exactly 0
    n, in_dim = ipts.shape
    hidden = w_emb.shape[0]
    gates_dim = w_ih.shape[0]
    h_out = gates_dim // 4

    # Pre-transpose weights so the kernel does lane-dense x @ W matmuls, and
    # fuse the two LSTM biases once on the host side.
    we_t = jnp.asarray(w_emb).T.astype(ipts.dtype)        # (in_dim, hidden)
    wih_t = jnp.asarray(w_ih).T.astype(ipts.dtype)        # (hidden, 4*h_out)
    be = jnp.asarray(b_emb).reshape(1, hidden).astype(ipts.dtype)
    bg = (jnp.asarray(b_ih) + jnp.asarray(b_hh)).reshape(1, gates_dim).astype(ipts.dtype)

    # Pad rows up to a multiple of the chosen block (never fall back to one
    # arbitrarily large block); padded rows are computed and then sliced off.
    rows8 = ((n + 7) // 8) * 8
    block_rows = _choose_block_rows(rows8, in_dim, hidden, gates_dim, h_out)
    rows_pad = ((n + block_rows - 1) // block_rows) * block_rows
    x = ipts if rows_pad == n else jnp.pad(ipts, ((0, rows_pad - n), (0, 0)))

    grid = (rows_pad // block_rows,)
    out = pl.pallas_call(
        functools.partial(_lstm_gen_kernel, h_out=h_out),
        out_shape=jax.ShapeDtypeStruct((rows_pad, h_out), ipts.dtype),
        grid_spec=pltpu.PrefetchScalarGridSpec(
            num_scalar_prefetch=0,
            grid=grid,
            in_specs=[
                pl.BlockSpec((block_rows, in_dim), lambda i: (i, 0)),   # x tile
                pl.BlockSpec((in_dim, hidden), lambda i: (0, 0)),       # W_e^T
                pl.BlockSpec((1, hidden), lambda i: (0, 0)),            # b_e
                pl.BlockSpec((hidden, gates_dim), lambda i: (0, 0)),    # W_ih^T
                pl.BlockSpec((1, gates_dim), lambda i: (0, 0)),         # b_ih+b_hh
            ],
            out_specs=pl.BlockSpec((block_rows, h_out), lambda i: (i, 0)),
        ),
        compiler_params=pltpu.CompilerParams(
            dimension_semantics=("parallel",),
        ),
    )(x, we_t, be, wih_t, bg)

    # (1, N, output_dim): seq_len dimension of 1, exactly like the PyTorch LSTM output.
    return out[:n][None]


if __name__ == "__main__":
    key = jax.random.PRNGKey(0)
    k_x, k_we, k_be, k_wih, k_whh, k_bih, k_bhh = jax.random.split(key, 7)

    # Small shapes consistent with the module: ipts is (batch, input_dim);
    # hidden_layer = 64 (module default), output_dim = 32.
    batch, input_dim, hidden_layer, output_dim = 16, 32, 64, 32

    ipts = jax.random.normal(k_x, (batch, input_dim), dtype=jnp.float32)
    s_e = 1.0 / (input_dim ** 0.5)
    s_l = 1.0 / (hidden_layer ** 0.5)
    w_emb = s_e * jax.random.normal(k_we, (hidden_layer, input_dim), dtype=jnp.float32)
    b_emb = s_e * jax.random.normal(k_be, (hidden_layer,), dtype=jnp.float32)
    w_ih = s_l * jax.random.normal(k_wih, (4 * output_dim, hidden_layer), dtype=jnp.float32)
    w_hh = s_l * jax.random.normal(k_whh, (4 * output_dim, output_dim), dtype=jnp.float32)
    b_ih = s_l * jax.random.normal(k_bih, (4 * output_dim,), dtype=jnp.float32)
    b_hh = s_l * jax.random.normal(k_bhh, (4 * output_dim,), dtype=jnp.float32)

    out = lstm_generator_forward(ipts, w_emb, b_emb, w_ih, w_hh, b_ih, b_hh)
    out = jax.block_until_ready(out)

    # Pure-JAX reference with identical semantics (seq_len=1, h0=c0=0).
    hp = jax.lax.Precision.HIGHEST
    emb = jnp.dot(ipts, w_emb.T, precision=hp) + b_emb
    gates = jnp.dot(emb, w_ih.T, precision=hp) + b_ih + b_hh
    i_g, f_g, g_g, o_g = jnp.split(gates, 4, axis=-1)
    c = jax.nn.sigmoid(i_g) * jnp.tanh(g_g)
    h = jax.nn.sigmoid(o_g) * jnp.tanh(c)
    ref = h[None]

    assert out.shape == (1, batch, output_dim) and out.dtype == ipts.dtype
    # Tolerance accommodates MXU f32 multi-pass vs XLA matmul differences; any
    # semantic error (wrong gate order / missing bias / transposed weight)
    # produces errors >= O(0.1).
    assert jnp.allclose(out, ref, atol=2e-2, rtol=2e-2), "mismatch vs reference"
    print("KERNEL_OK")
</pallas_src>

<mosaic_0001>
module attributes {stable_mosaic.version = 11 : i64} {
  func.func @_lstm_gen_kernel(%arg0: i32, %arg1: memref<8x32xf32, #tpu.memory_space<vmem>>, %arg2: memref<32x64xf32, #tpu.memory_space<vmem>>, %arg3: memref<1x64xf32, #tpu.memory_space<vmem>>, %arg4: memref<64x128xf32, #tpu.memory_space<vmem>>, %arg5: memref<1x128xf32, #tpu.memory_space<vmem>>, %arg6: memref<8x32xf32, #tpu.memory_space<vmem>>) attributes {dimension_semantics = [#tpu.dimension_semantics<parallel>], iteration_bounds = array<i64: 2>, scalar_prefetch = 0 : i64, scratch_operands = 0 : i64, tpu.core_type = #tpu.core_type<tc>, window_params = [{transform_indices = @transform_0, window_bounds = array<i64: 8, 32>}, {pipeline_mode = #tpu.pipeline_mode<synchronous>, transform_indices = @transform_1, window_bounds = array<i64: 32, 64>}, {pipeline_mode = #tpu.pipeline_mode<synchronous>, transform_indices = @transform_2, window_bounds = array<i64: 1, 64>}, {pipeline_mode = #tpu.pipeline_mode<synchronous>, transform_indices = @transform_3, window_bounds = array<i64: 64, 128>}, {pipeline_mode = #tpu.pipeline_mode<synchronous>, transform_indices = @transform_4, window_bounds = array<i64: 1, 128>}, {transform_indices = @transform_5, window_bounds = array<i64: 8, 32>}]} {
    %c0 = arith.constant 0 : index
    %c0_0 = arith.constant 0 : index
    %0 = vector.load %arg1[%c0, %c0_0] : memref<8x32xf32, #tpu.memory_space<vmem>>, vector<8x32xf32>
    %c0_1 = arith.constant 0 : index
    %c0_2 = arith.constant 0 : index
    %1 = vector.load %arg2[%c0_1, %c0_2] : memref<32x64xf32, #tpu.memory_space<vmem>>, vector<32x64xf32>
    %cst = arith.constant dense<0.000000e+00> : vector<8x64xf32>
    %2 = tpu.matmul %0, %1, %cst {dimension_numbers = #tpu.dot_dimension_numbers<[1], [0], [0], [1], [0, 0, 1, 1], [], []>} : vector<8x32xf32>, vector<32x64xf32>, vector<8x64xf32> -> vector<8x64xf32>
    %c0_3 = arith.constant 0 : index
    %c0_4 = arith.constant 0 : index
    %3 = vector.load %arg3[%c0_3, %c0_4] : memref<1x64xf32, #tpu.memory_space<vmem>>, vector<1x64xf32>
    %4 = vector.broadcast %3 : vector<1x64xf32> to vector<8x64xf32>
    %5 = arith.addf %2, %4 : vector<8x64xf32>
    %c0_5 = arith.constant 0 : index
    %c0_6 = arith.constant 0 : index
    %6 = vector.load %arg4[%c0_5, %c0_6] : memref<64x128xf32, #tpu.memory_space<vmem>>, vector<64x128xf32>
    %cst_7 = arith.constant dense<0.000000e+00> : vector<8x128xf32>
    %7 = tpu.matmul %5, %6, %cst_7 {dimension_numbers = #tpu.dot_dimension_numbers<[1], [0], [0], [1], [0, 0, 1, 1], [], []>} : vector<8x64xf32>, vector<64x128xf32>, vector<8x128xf32> -> vector<8x128xf32>
    %c0_8 = arith.constant 0 : index
    %c0_9 = arith.constant 0 : index
    %8 = vector.load %arg5[%c0_8, %c0_9] : memref<1x128xf32, #tpu.memory_space<vmem>>, vector<1x128xf32>
    %9 = vector.broadcast %8 : vector<1x128xf32> to vector<8x128xf32>
    %10 = arith.addf %7, %9 : vector<8x128xf32>
    %11 = vector.extract_strided_slice %10 {offsets = [0, 0], sizes = [8, 32], strides = [1, 1]} : vector<8x128xf32> to vector<8x32xf32>
    %12 = arith.negf %11 : vector<8x32xf32>
    %13 = math.exp %12 : vector<8x32xf32>
    %cst_10 = arith.constant 1.000000e+00 : f32
    %14 = vector.broadcast %cst_10 : f32 to vector<8x32xf32>
    %15 = arith.addf %14, %13 : vector<8x32xf32>
    %16 = arith.divf %14, %15 : vector<8x32xf32>
    %17 = vector.extract_strided_slice %10 {offsets = [0, 64], sizes = [8, 32], strides = [1, 1]} : vector<8x128xf32> to vector<8x32xf32>
    %18 = math.tanh %17 : vector<8x32xf32>
    %19 = vector.extract_strided_slice %10 {offsets = [0, 96], sizes = [8, 32], strides = [1, 1]} : vector<8x128xf32> to vector<8x32xf32>
    %20 = arith.negf %19 : vector<8x32xf32>
    %21 = math.exp %20 : vector<8x32xf32>
    %cst_11 = arith.constant 1.000000e+00 : f32
    %22 = vector.broadcast %cst_11 : f32 to vector<8x32xf32>
    %23 = arith.addf %22, %21 : vector<8x32xf32>
    %24 = arith.divf %22, %23 : vector<8x32xf32>
    %25 = arith.mulf %16, %18 : vector<8x32xf32>
    %26 = math.tanh %25 : vector<8x32xf32>
    %27 = arith.mulf %24, %26 : vector<8x32xf32>
    %c0_12 = arith.constant 0 : index
    %c0_13 = arith.constant 0 : index
    %28 = vector.load %arg6[%c0_12, %c0_13] : memref<8x32xf32, #tpu.memory_space<vmem>>, vector<8x32xf32>
    tpu.vector_store %arg6[%c0_12, %c0_13], %27 {strides = array<i32>} : memref<8x32xf32, #tpu.memory_space<vmem>>, vector<8x32xf32>,
    return
  }
  func.func @transform_0(%arg0: i32) -> (i32, i32) {
    %c0_i32 = arith.constant 0 : i32
    %c0_i32_0 = arith.constant 0 : i32
    return %arg0, %c0_i32 : i32, i32
  }
  func.func @transform_1(%arg0: i32) -> (i32, i32) {
    %c0_i32 = arith.constant 0 : i32
    %c0_i32_0 = arith.constant 0 : i32
    %c0_i32_1 = arith.constant 0 : i32
    return %c0_i32, %c0_i32_0 : i32, i32
  }
  func.func @transform_2(%arg0: i32) -> (i32, i32) {
    %c0_i32 = arith.constant 0 : i32
    %c0_i32_0 = arith.constant 0 : i32
    %c0_i32_1 = arith.constant 0 : i32
    return %c0_i32, %c0_i32_0 : i32, i32
  }
  func.func @transform_3(%arg0: i32) -> (i32, i32) {
    %c0_i32 = arith.constant 0 : i32
    %c0_i32_0 = arith.constant 0 : i32
    %c0_i32_1 = arith.constant 0 : i32
    return %c0_i32, %c0_i32_0 : i32, i32
  }
  func.func @transform_4(%arg0: i32) -> (i32, i32) {
    %c0_i32 = arith.constant 0 : i32
    %c0_i32_0 = arith.constant 0 : i32
    %c0_i32_1 = arith.constant 0 : i32
    return %c0_i32, %c0_i32_0 : i32, i32
  }
  func.func @transform_5(%arg0: i32) -> (i32, i32) {
    %c0_i32 = arith.constant 0 : i32
    %c0_i32_0 = arith.constant 0 : i32
    return %arg0, %c0_i32 : i32, i32
  }
}

</mosaic_0001>

<llo_original>
// kernel: tpu_custom_call.1
$region0: #{tpu_custom_call.1}
  #allocation0 [shape = 'u32[]', space=smem, size = 0x4, offset = 0x4, fixed_abs, tag = 'smem constant byte address 0x4 - core index']
  #allocation1 [shape = 'u32[144,128]{1,0:T(1,128)}', space=vmem, size = 0x12000, scoped, tag = 'internal scratch']
  %s0 = inlined_call_operand.hbm [shape: f32[16,32], index: 0, kind: input, shape index: {}]
  %s1 = inlined_call_operand.hbm [shape: f32[32,64], index: 1, kind: input, shape index: {}]
  %s2 = inlined_call_operand.vmem [shape: f32[1,64], index: 2, kind: input, shape index: {}]
  %s3 = inlined_call_operand.hbm [shape: f32[64,128], index: 3, kind: input, shape index: {}]
  %s4 = inlined_call_operand.vmem [shape: f32[1,128], index: 4, kind: input, shape index: {}]
  %s5 = inlined_call_operand.hbm [shape: f32[16,32], index: 5, kind: output, shape index: {}]
  %s6 = sld [smem:[#allocation0]]
  $region65: #{tpu_custom_call.1} parent=0
    _
  %s8 = ssub.s32 1, %s6
  %s9 = scalar_select 0, %s8, %s6
  $region1: #{tpu_custom_call.1} parent=0
    #allocation2 [shape = 'u8[8192]{0}', space=vmem, size = 0x2000, scoped, tag = 'input window, operand 0']
    #allocation3 [shape = 's32[2]{0}', space=sflag, size = 0x8, scoped, tag = 'scoped memory for tpu_custom_call.1']
    #allocation4 [shape = 's32[2]{0}', space=sflag, size = 0x8, scoped, tag = 'scoped memory for tpu_custom_call.1']
    #allocation5 [shape = 'u8[16384]{0}', space=vmem, size = 0x4000, scoped, tag = 'input window, operand 1, single buffered']
    #allocation6 [shape = 's32[1]{0}', space=sflag, size = 0x4, scoped, tag = 'scoped memory for tpu_custom_call.1']
    #allocation7 [shape = 'u8[32768]{0}', space=vmem, size = 0x8000, scoped, tag = 'input window, operand 3, single buffered']
    #allocation8 [shape = 'u8[8192]{0}', space=vmem, size = 0x2000, scoped, tag = 'output window, operand 0']
    %10 = vsyncpa [#allocation3], 0
    %s11 = scalar_lea.sflag [#allocation3], 1
    %12 = vsyncpa %s11, 0
    %13 = vsyncpa [#allocation6], 0
    %14 = vsyncpa [#allocation4], 0
    %s15 = scalar_lea.sflag [#allocation4], 1
    %16 = vsyncpa %s15, 0
    loop: start=0, step=1, limit=4
    $region2: #{tpu_custom_call.1} parent=1 // loop_pre_header
      _
    $region3: #{tpu_custom_call.1} parent=1 // loop_header
      %s18 = sphi 0, %s22
      %p19 = scmp.ge.s32.totalorder %s18, 4
      %s28 = sphi 0, %s30
      %s31 = sphi 0, %s28
      %s32 = sphi 0, %s31
      %s48 = sphi 0, %s32
      %s52 = sphi 0, %s52
      %s54 = sphi 0, %s52
      %s55 = sphi 0, %s54
      %s69 = sphi 0, %s55
      %s73 = sphi 0, %s73
      %s75 = sphi 0, %s73
      %s76 = sphi 0, %s75
      %s90 = sphi 0, %s76
      %s94 = sphi 0, %s94
      %s96 = sphi 0, %s94
      %s97 = sphi 0, %s96
      %s111 = sphi 0, %s97
      %s115 = sphi 0, %s115
      %s117 = sphi 0, %s115
      %s118 = sphi 0, %s117
      %s132 = sphi 0, %s118
      %s138 = sphi 0, %s140
      %s141 = sphi 0, %s138
      %s142 = sphi 0, %s141
      %s158 = sphi 0, %s142
    $region4: #{tpu_custom_call.1} parent=1 // loop_header_branch
      %21 = sbr.rel (%p19) target = $region8
    $region5: #{tpu_custom_call.1} parent=1 // loop_body
      %s23 = ssub.s32 %s18, 1
      %s24 = ssub.s32 %s18, 2
      %s25 = sadd.s32 %s18, 1
      %s26 = ssub.s32 %s18, %s25
      %p27 = scmp.eq.s32.totalorder %s26, 0
      %s29 = sadd.s32 %s28, 1
      %s30 = scalar_select %p27, %s28, %s29
      %p33 = pneg %p27
      %p34 = scmp.eq.s32.totalorder %s18, 1
      %p35 = por %p33, %p34
      %p36 = scmp.ne.s32.totalorder %s28, %s31
      %p37 = scmp.eq.s32.totalorder %s18, 0
      %p38 = por %p36, %p37
      %p39 = scmp.ne.s32.totalorder %s28, %s31
      %p40 = scmp.eq.s32.totalorder %s23, 1
      %p41 = por %p39, %p40
      %p42 = scmp.ne.s32.totalorder %s31, %s32
      %p43 = scmp.eq.s32.totalorder %s23, 0
      %p44 = por %p42, %p43
      %p45 = scmp.ne.s32.totalorder %s31, %s32
      %p46 = scmp.eq.s32.totalorder %s24, 1
      %p47 = por %p45, %p46
      %p49 = scmp.ne.s32.totalorder %s32, %s48
      %p50 = scmp.eq.s32.totalorder %s24, 0
      %p51 = por %p49, %p50
      %s53 = sadd.s32 %s52, 1
      %p56 = scmp.eq.s32.totalorder %s18, 1
      %p57 = scmp.ne.s32.totalorder %s52, %s54
      %p58 = scmp.eq.s32.totalorder %s18, 0
      %p59 = por %p57, %p58
      %p60 = scmp.ne.s32.totalorder %s52, %s54
      %p61 = scmp.eq.s32.totalorder %s23, 1
      %p62 = por %p60, %p61
      %p63 = scmp.ne.s32.totalorder %s54, %s55
      %p64 = scmp.eq.s32.totalorder %s23, 0
      %p65 = por %p63, %p64
      %p66 = scmp.ne.s32.totalorder %s54, %s55
      %p67 = scmp.eq.s32.totalorder %s24, 1
      %p68 = por %p66, %p67
      %p70 = scmp.ne.s32.totalorder %s55, %s69
      %p71 = scmp.eq.s32.totalorder %s24, 0
      %p72 = por %p70, %p71
      %s74 = sadd.s32 %s73, 1
      %p77 = scmp.eq.s32.totalorder %s18, 1
      %p78 = scmp.ne.s32.totalorder %s73, %s75
      %p79 = scmp.eq.s32.totalorder %s18, 0
      %p80 = por %p78, %p79
      %p81 = scmp.ne.s32.totalorder %s73, %s75
      %p82 = scmp.eq.s32.totalorder %s23, 1
      %p83 = por %p81, %p82
      %p84 = scmp.ne.s32.totalorder %s75, %s76
      %p85 = scmp.eq.s32.totalorder %s23, 0
      %p86 = por %p84, %p85
      %p87 = scmp.ne.s32.totalorder %s75, %s76
      %p88 = scmp.eq.s32.totalorder %s24, 1
      %p89 = por %p87, %p88
      %p91 = scmp.ne.s32.totalorder %s76, %s90
      %p92 = scmp.eq.s32.totalorder %s24, 0
      %p93 = por %p91, %p92
      %s95 = sadd.s32 %s94, 1
      %p98 = scmp.eq.s32.totalorder %s18, 1
      %p99 = scmp.ne.s32.totalorder %s94, %s96
      %p100 = scmp.eq.s32.totalorder %s18, 0
      %p101 = por %p99, %p100
      %p102 = scmp.ne.s32.totalorder %s94, %s96
      %p103 = scmp.eq.s32.totalorder %s23, 1
      %p104 = por %p102, %p103
      %p105 = scmp.ne.s32.totalorder %s96, %s97
      %p106 = scmp.eq.s32.totalorder %s23, 0
      %p107 = por %p105, %p106
      %p108 = scmp.ne.s32.totalorder %s96, %s97
      %p109 = scmp.eq.s32.totalorder %s24, 1
      %p110 = por %p108, %p109
      %p112 = scmp.ne.s32.totalorder %s97, %s111
      %p113 = scmp.eq.s32.totalorder %s24, 0
      %p114 = por %p112, %p113
      %s116 = sadd.s32 %s115, 1
      %p119 = scmp.eq.s32.totalorder %s18, 1
      %p120 = scmp.ne.s32.totalorder %s115, %s117
      %p121 = scmp.eq.s32.totalorder %s18, 0
      %p122 = por %p120, %p121
      %p123 = scmp.ne.s32.totalorder %s115, %s117
      %p124 = scmp.eq.s32.totalorder %s23, 1
      %p125 = por %p123, %p124
      %p126 = scmp.ne.s32.totalorder %s117, %s118
      %p127 = scmp.eq.s32.totalorder %s23, 0
      %p128 = por %p126, %p127
      %p129 = scmp.ne.s32.totalorder %s117, %s118
      %p130 = scmp.eq.s32.totalorder %s24, 1
      %p131 = por %p129, %p130
      %p133 = scmp.ne.s32.totalorder %s118, %s132
      %p134 = scmp.eq.s32.totalorder %s24, 0
      %p135 = por %p133, %p134
      %s136 = ssub.s32 %s18, %s25
      %p137 = scmp.eq.s32.totalorder %s136, 0
      %s139 = sadd.s32 %s138, 1
      %s140 = scalar_select %p137, %s138, %s139
      %p143 = pneg %p137
      %p144 = scmp.eq.s32.totalorder %s18, 1
      %p145 = por %p143, %p144
      %p146 = scmp.ne.s32.totalorder %s138, %s141
      %p147 = scmp.eq.s32.totalorder %s18, 0
      %p148 = por %p146, %p147
      %p149 = scmp.ne.s32.totalorder %s138, %s141
      %p150 = scmp.eq.s32.totalorder %s23, 1
      %p151 = por %p149, %p150
      %p152 = scmp.ne.s32.totalorder %s141, %s142
      %p153 = scmp.eq.s32.totalorder %s23, 0
      %p154 = por %p152, %p153
      %p155 = scmp.ne.s32.totalorder %s141, %s142
      %p156 = scmp.eq.s32.totalorder %s24, 1
      %p157 = por %p155, %p156
      %p159 = scmp.ne.s32.totalorder %s142, %s158
      %p160 = scmp.eq.s32.totalorder %s24, 0
      %p161 = por %p159, %p160
      %p162 = scmp.le.s32.totalorder 1, %s18
      %p163 = scmp.lt.s32.totalorder %s18, 3
      %p164 = pnand %p162, %p163
      %p165 = pneg %p164
      // Predicated region
      $region9: #{tpu_custom_call.1} parent=5 // pred_check
        _
      $region10: #{tpu_custom_call.1} parent=5 // pred_check_branch
        %167 = sbr.rel (%p164) target = $region12
      $region11: #{tpu_custom_call.1} parent=5 // pred_region
        %s168 = ssub.s32 %s18, 1
        // Predicated region
        $region13: #{tpu_custom_call.1} parent=11 // pred_check
          %p169 = pneg %p65
        $region14: #{tpu_custom_call.1} parent=11 // pred_check_branch
          %171 = sbr.rel (%p169) target = $region16
        $region15: #{tpu_custom_call.1} parent=11 // pred_region
          %s173 = ssub.s32 512, 512
          %174 = vsyncadd [#allocation6], %s173
          %s175 = sshll.u32 [#allocation5], 4
          %s176 = int_to_ptr.vmem [resolvable:$true] %s175
          %181 = dma.hbm_to_vmem [thread:$0]  %s1, 512, %s176, [#allocation6], 128, 128, 8
        $region16: #{tpu_custom_call.1} parent=11 // pred_fallthru
          _
        // Predicated region
        $region17: #{tpu_custom_call.1} parent=11 // pred_check
          %p182 = pneg %p86
        $region18: #{tpu_custom_call.1} parent=11 // pred_check_branch
          %184 = sbr.rel (%p182) target = $region20
        $region19: #{tpu_custom_call.1} parent=11 // pred_region
          _
        $region20: #{tpu_custom_call.1} parent=11 // pred_fallthru
          _
        // Predicated region
        $region21: #{tpu_custom_call.1} parent=11 // pred_check
          %p185 = pneg %p107
        $region22: #{tpu_custom_call.1} parent=11 // pred_check_branch
          %187 = sbr.rel (%p185) target = $region24
        $region23: #{tpu_custom_call.1} parent=11 // pred_region
          %s189 = ssub.s32 1024, 1024
          %190 = vsyncadd [#allocation6], %s189
          %s191 = sshll.u32 [#allocation7], 4
          %s192 = int_to_ptr.vmem [resolvable:$true] %s191
          %197 = dma.hbm_to_vmem [thread:$0]  %s3, 1024, %s192, [#allocation6], 128, 128, 8
        $region24: #{tpu_custom_call.1} parent=11 // pred_fallthru
          _
        // Predicated region
        $region25: #{tpu_custom_call.1} parent=11 // pred_check
          %p198 = pneg %p128
        $region26: #{tpu_custom_call.1} parent=11 // pred_check_branch
          %200 = sbr.rel (%p198) target = $region28
        $region27: #{tpu_custom_call.1} parent=11 // pred_region
          _
        $region28: #{tpu_custom_call.1} parent=11 // pred_fallthru
          _
      $region12: #{tpu_custom_call.1} parent=5 // pred_fallthru
        _
      %p201 = scmp.lt.s32.totalorder %s18, 2
      // Predicated region
      $region29: #{tpu_custom_call.1} parent=5 // pred_check
        %p202 = pneg %p201
      $region30: #{tpu_custom_call.1} parent=5 // pred_check_branch
        %204 = sbr.rel (%p202) target = $region32
      $region31: #{tpu_custom_call.1} parent=5 // pred_region
        // Predicated region
        $region33: #{tpu_custom_call.1} parent=31 // pred_check
          %p205 = pneg %p38
        $region34: #{tpu_custom_call.1} parent=31 // pred_check_branch
          %207 = sbr.rel (%p205) target = $region36
        $region35: #{tpu_custom_call.1} parent=31 // pred_region
          %s208 = sand.u32 %s28, 1
          %s209 = scalar_lea.sflag [#allocation3], %s208
          %s210 = sand.u32 %s28, 1
          %s211 = smul.addr %s210, 8
          %s212 = scalar_lea.vmem [#allocation2], %s211
          %s214 = ssub.s32 128, 128
          %215 = vsyncadd %s209, %s214
          %s216 = smul.addr %s18, 128
          %s217 = scalar_lea.hbm %s0, %s216
          %s219 = sshll.u32 %s212, 4
          %s220 = int_to_ptr.vmem [resolvable:$true] %s219
          %222 = dma.hbm_to_vmem [thread:$0]  %s217, 128, %s220, %s209
        $region36: #{tpu_custom_call.1} parent=31 // pred_fallthru
          _
      $region32: #{tpu_custom_call.1} parent=5 // pred_fallthru
        _
      %p223 = scmp.le.s32.totalorder 1, %s18
      %p224 = scmp.lt.s32.totalorder %s18, 3
      %p225 = pnand %p223, %p224
      %p226 = pneg %p225
      // Predicated region
      $region37: #{tpu_custom_call.1} parent=5 // pred_check
        _
      $region38: #{tpu_custom_call.1} parent=5 // pred_check_branch
        %228 = sbr.rel (%p225) target = $region40
      $region39: #{tpu_custom_call.1} parent=5 // pred_region
        %s229 = ssub.s32 %s18, 1
        %s230 = sand.u32 %s31, 1
        %s231 = scalar_lea.sflag [#allocation3], %s230
        %s232 = sand.u32 %s31, 1
        %s233 = smul.addr %s232, 8
        %s234 = scalar_lea.vmem [#allocation2], %s233
        // Predicated region
        $region41: #{tpu_custom_call.1} parent=39 // pred_check
          %p235 = pneg %p44
        $region42: #{tpu_custom_call.1} parent=39 // pred_check_branch
          %237 = sbr.rel (%p235) target = $region44
        $region43: #{tpu_custom_call.1} parent=39 // pred_region
          %238 = dma.done %s231, 128
        $region44: #{tpu_custom_call.1} parent=39 // pred_fallthru
          _
        // Predicated region
        $region45: #{tpu_custom_call.1} parent=39 // pred_check
          %p239 = pneg %p65
        $region46: #{tpu_custom_call.1} parent=39 // pred_check_branch
          %241 = sbr.rel (%p239) target = $region48
        $region47: #{tpu_custom_call.1} parent=39 // pred_region
          %242 = dma.done [#allocation6], 512
        $region48: #{tpu_custom_call.1} parent=39 // pred_fallthru
          _
        // Predicated region
        $region49: #{tpu_custom_call.1} parent=39 // pred_check
          %p243 = pneg %p107
        $region50: #{tpu_custom_call.1} parent=39 // pred_check_branch
          %245 = sbr.rel (%p243) target = $region52
        $region51: #{tpu_custom_call.1} parent=39 // pred_region
          %246 = dma.done [#allocation6], 1024
        $region52: #{tpu_custom_call.1} parent=39 // pred_fallthru
          _
        %s247 = sand.u32 %s31, 1
        %s248 = scalar_lea.sflag [#allocation3], %s247
        %s249 = sand.u32 %s31, 1
        %s250 = smul.addr %s249, 8
        %s251 = scalar_lea.vmem [#allocation2], %s250
        %p252 = pneg %p44
        %p253 = pneg %p41
        %p254 = pneg %p65
        %p255 = pneg %p62
        %p256 = pneg %p86
        %p257 = pneg %p83
        %p258 = pneg %p107
        %p259 = pneg %p104
        %p260 = pneg %p128
        %p261 = pneg %p125
        %p262 = pneg %p154
        %p263 = pneg %p151
        %s264 = sand.u32 %s141, 1
        %s265 = scalar_lea.sflag [#allocation4], %s264
        %s266 = sand.u32 %s141, 1
        %s267 = smul.addr %s266, 8
        %s268 = scalar_lea.vmem [#allocation8], %s267
        %v269 = vld [vmem:[%s234] sm:$0xff]
        %v270 = vld [vmem:[#allocation5] sm:$0xff]
        %v271 = vld [vmem:[#allocation5 + $0x8] sm:$0xff]
        %v272 = vld [vmem:[#allocation5 + $0x10] sm:$0xff]
        %v273 = vld [vmem:[#allocation5 + $0x18] sm:$0xff]
        %v274 = vld [vmem:[%s2] sm:$0x1]
        %v276 = vlaneseq
        %v277 = vshrl.u32 %v276, 7
        %v278 = vsub.s32 0, %v277
        %v279 = vrot.slane %v274, %v278
        %vm281 = vcmask 261120
        %v283 = vsel %vm281, %v269, 0
        %285 = vmatprep.subr.mxu0 0.0
        %286 = vmatpush1.msra.mxu0 0.0
        %287 = vmatprep.subr.mxu0 0.0
        %288 = vmatpush1.msra.mxu0 0.0
        %289 = vmatprep.subr.mxu0 0.0
        %290 = vmatpush1.msra.mxu0 0.0
        %291 = vmatprep.subr.mxu0 0.0
        %292 = vmatpush1.msra.mxu0 0.0
        %293 = vmatprep.subr.mxu0 0.0
        %294 = vmatpush1.msra.mxu0 0.0
        %295 = vmatprep.subr.mxu0 0.0
        %296 = vmatpush1.msra.mxu0 0.0
        %297 = vmatprep.subr.mxu0 0.0
        %298 = vmatpush1.msra.mxu0 0.0
        %299 = vmatprep.subr.mxu0 0.0
        %300 = vmatpush1.msra.mxu0 0.0
        %301 = vmatprep.subr.mxu0 0.0
        %302 = vmatpush1.msra.mxu0 0.0
        %303 = vmatprep.subr.mxu0 0.0
        %304 = vmatpush1.msra.mxu0 0.0
        %305 = vmatprep.subr.mxu0 0.0
        %306 = vmatpush1.msra.mxu0 0.0
        %307 = vmatprep.subr.mxu0 0.0
        %308 = vmatpush1.msra.mxu0 0.0
        %309 = vmatprep.subr.mxu0 0.0
        %310 = vmatpush1.msra.mxu0 %v273
        %311 = vmatprep.subr.mxu0 0.0
        %312 = vmatpush1.msra.mxu0 %v272
        %313 = vmatprep.subr.mxu0 0.0
        %314 = vmatpush1.msra.mxu0 %v271
        %315 = vmatprep.subr.mxu0 0.0
        %316 = vmatpush1.msra.mxu0 %v270
        %317 = vmatprep.subr.mxu0 0.0
        %318 = vmatpush2.msra.mxu0 0.0
        %319 = vmatprep.subr.mxu0 0.0
        %320 = vmatpush2.msra.mxu0 0.0
        %321 = vmatprep.subr.mxu0 0.0
        %322 = vmatpush2.msra.mxu0 0.0
        %323 = vmatprep.subr.mxu0 0.0
        %324 = vmatpush2.msra.mxu0 0.0
        %325 = vmatprep.subr.mxu0 0.0
        %326 = vmatpush2.msra.mxu0 0.0
        %327 = vmatprep.subr.mxu0 0.0
        %328 = vmatpush2.msra.mxu0 0.0
        %329 = vmatprep.subr.mxu0 0.0
        %330 = vmatpush2.msra.mxu0 0.0
        %331 = vmatprep.subr.mxu0 0.0
        %332 = vmatpush2.msra.mxu0 0.0
        %333 = vmatprep.subr.mxu0 0.0
        %334 = vmatpush2.msra.mxu0 0.0
        %335 = vmatprep.subr.mxu0 0.0
        %336 = vmatpush2.msra.mxu0 0.0
        %337 = vmatprep.subr.mxu0 0.0
        %338 = vmatpush2.msra.mxu0 0.0
        %339 = vmatprep.subr.mxu0 0.0
        %340 = vmatpush2.msra.mxu0 0.0
        %341 = vmatprep.subr.mxu0 0.0
        %342 = vmatpush2.msra.mxu0 0.0
        %343 = vmatprep.subr.mxu0 0.0
        %344 = vmatpush2.msra.mxu0 0.0
        %345 = vmatprep.subr.mxu0 0.0
        %346 = vmatpush2.msra.mxu0 0.0
        %347 = vmatprep.subr.mxu0 0.0
        %348 = vmatpush2.msra.mxu0 0.0
        %349 = vmatprep.mubr.f32.mxu0 0.0
        %350 = vmatmul.mubr.f32.gmra.mxu0 %v283
        %v351 = vpop.f32.mrf.mxu0
        %v352 = vadd.f32 %v279, %v351
        %v353 = vpop.f32.mrf.mxu0
        %354 = vdwg.mxu0
        %v355 = vld [vmem:[#allocation7] sm:$0xff]
        %v356 = vld [vmem:[#allocation7 + $0x8] sm:$0xff]
        %v357 = vld [vmem:[#allocation7 + $0x10] sm:$0xff]
        %v358 = vld [vmem:[#allocation7 + $0x18] sm:$0xff]
        %v359 = vld [vmem:[#allocation7 + $0x20] sm:$0xff]
        %v360 = vld [vmem:[#allocation7 + $0x28] sm:$0xff]
        %v361 = vld [vmem:[#allocation7 + $0x30] sm:$0xff]
        %v362 = vld [vmem:[#allocation7 + $0x38] sm:$0xff]
        %v363 = vld [vmem:[%s4] sm:$0x1]
        %v365 = vlaneseq
        %v366 = vshrl.u32 %v365, 7
        %v367 = vsub.s32 0, %v366
        %v368 = vrot.slane %v363, %v367
        %vm370 = vcmask 523264
        %v372 = vsel %vm370, %v352, 0
        %374 = vmatprep.subr.mxu0 0.0
        %375 = vmatpush1.msra.mxu0 0.0
        %376 = vmatprep.subr.mxu0 0.0
        %377 = vmatpush1.msra.mxu0 0.0
        %378 = vmatprep.subr.mxu0 0.0
        %379 = vmatpush1.msra.mxu0 0.0
        %380 = vmatprep.subr.mxu0 0.0
        %381 = vmatpush1.msra.mxu0 0.0
        %382 = vmatprep.subr.mxu0 0.0
        %383 = vmatpush1.msra.mxu0 0.0
        %384 = vmatprep.subr.mxu0 0.0
        %385 = vmatpush1.msra.mxu0 0.0
        %386 = vmatprep.subr.mxu0 0.0
        %387 = vmatpush1.msra.mxu0 0.0
        %388 = vmatprep.subr.mxu0 0.0
        %389 = vmatpush1.msra.mxu0 0.0
        %390 = vmatprep.subr.mxu0 0.0
        %391 = vmatpush1.msra.mxu0 %v362
        %392 = vmatprep.subr.mxu0 0.0
        %393 = vmatpush1.msra.mxu0 %v361
        %394 = vmatprep.subr.mxu0 0.0
        %395 = vmatpush1.msra.mxu0 %v360
        %396 = vmatprep.subr.mxu0 0.0
        %397 = vmatpush1.msra.mxu0 %v359
        %398 = vmatprep.subr.mxu0 0.0
        %399 = vmatpush1.msra.mxu0 %v358
        %400 = vmatprep.subr.mxu0 0.0
        %401 = vmatpush1.msra.mxu0 %v357
        %402 = vmatprep.subr.mxu0 0.0
        %403 = vmatpush1.msra.mxu0 %v356
        %404 = vmatprep.subr.mxu0 0.0
        %405 = vmatpush1.msra.mxu0 %v355
        %406 = vmatprep.subr.mxu0 0.0
        %407 = vmatpush2.msra.mxu0 0.0
        %408 = vmatprep.subr.mxu0 0.0
        %409 = vmatpush2.msra.mxu0 0.0
        %410 = vmatprep.subr.mxu0 0.0
        %411 = vmatpush2.msra.mxu0 0.0
        %412 = vmatprep.subr.mxu0 0.0
        %413 = vmatpush2.msra.mxu0 0.0
        %414 = vmatprep.subr.mxu0 0.0
        %415 = vmatpush2.msra.mxu0 0.0
        %416 = vmatprep.subr.mxu0 0.0
        %417 = vmatpush2.msra.mxu0 0.0
        %418 = vmatprep.subr.mxu0 0.0
        %419 = vmatpush2.msra.mxu0 0.0
        %420 = vmatprep.subr.mxu0 0.0
        %421 = vmatpush2.msra.mxu0 0.0
        %422 = vmatprep.subr.mxu0 0.0
        %423 = vmatpush2.msra.mxu0 0.0
        %424 = vmatprep.subr.mxu0 0.0
        %425 = vmatpush2.msra.mxu0 0.0
        %426 = vmatprep.subr.mxu0 0.0
        %427 = vmatpush2.msra.mxu0 0.0
        %428 = vmatprep.subr.mxu0 0.0
        %429 = vmatpush2.msra.mxu0 0.0
        %430 = vmatprep.subr.mxu0 0.0
        %431 = vmatpush2.msra.mxu0 0.0
        %432 = vmatprep.subr.mxu0 0.0
        %433 = vmatpush2.msra.mxu0 0.0
        %434 = vmatprep.subr.mxu0 0.0
        %435 = vmatpush2.msra.mxu0 0.0
        %436 = vmatprep.subr.mxu0 0.0
        %437 = vmatpush2.msra.mxu0 0.0
        %438 = vmatprep.mubr.f32.mxu0 0.0
        %439 = vmatmul.mubr.f32.gmra.mxu0 %v372
        %v440 = vpop.f32.mrf.mxu0
        %v441 = vadd.f32 %v368, %v440
        %v442 = vpop.f32.mrf.mxu0
        %443 = vdwg.mxu0
        %v444 = vxor.u32 %v441, 2147483648
        %v445 = vmul.f32 %v444, 1.442695
        %v446 = vpow.pop %v445
        %v447 = vadd.f32 %v446, 1.0
        %v448 = vrcp.pop %v447
        %v449 = vmul.f32 1.0, %v448
        %v450 = vtanh.pop %v441
        %452 = vrot.lane.b32.xlu0 %v450, 64
        %v453 = vpop.permute.xlu0 %452
        %v455 = vmul.f32 %v449, %v453
        %v456 = vtanh.pop %v455
        %458 = vrot.lane.b32.xlu0 %v456, 96
        %v459 = vpop.permute.xlu0 %458
        %v461 = vmul.f32 %v449, %v459
        %463 = vrot.lane.b32.xlu0 %v461, 32
        %v464 = vpop.permute.xlu0 %463
        %466 = vst.msk [vmem:[%s268] sm:$0xff] %vm281, %v464
        %s467 = sand.u32 %s141, 1
        %s468 = scalar_lea.sflag [#allocation4], %s467
        %s469 = sand.u32 %s141, 1
        %s470 = smul.addr %s469, 8
        %s471 = scalar_lea.vmem [#allocation8], %s470
        // Predicated region
        $region53: #{tpu_custom_call.1} parent=39 // pred_check
          %p472 = pneg %p151
        $region54: #{tpu_custom_call.1} parent=39 // pred_check_branch
          %474 = sbr.rel (%p472) target = $region56
        $region55: #{tpu_custom_call.1} parent=39 // pred_region
          %s476 = ssub.s32 128, 128
          %477 = vsyncadd %s468, %s476
          %s478 = smul.addr %s23, 128
          %s479 = scalar_lea.hbm %s5, %s478
          %s481 = sshll.u32 %s471, 4
          %s482 = int_to_ptr.vmem [resolvable:$true] %s481
          %484 = dma.vmem_to_hbm [thread:$0]  %s482, 128, %s479, %s468
        $region56: #{tpu_custom_call.1} parent=39 // pred_fallthru
          _
      $region40: #{tpu_custom_call.1} parent=5 // pred_fallthru
        _
      %p485 = scmp.le.s32.totalorder 2, %s18
      // Predicated region
      $region57: #{tpu_custom_call.1} parent=5 // pred_check
        %p486 = pneg %p485
      $region58: #{tpu_custom_call.1} parent=5 // pred_check_branch
        %488 = sbr.rel (%p486) target = $region60
      $region59: #{tpu_custom_call.1} parent=5 // pred_region
        %s489 = ssub.s32 %s18, 2
        // Predicated region
        $region61: #{tpu_custom_call.1} parent=59 // pred_check
          %p490 = pneg %p157
        $region62: #{tpu_custom_call.1} parent=59 // pred_check_branch
          %492 = sbr.rel (%p490) target = $region64
        $region63: #{tpu_custom_call.1} parent=59 // pred_region
          %s493 = sand.u32 %s142, 1
          %s494 = scalar_lea.sflag [#allocation4], %s493
          %s495 = sand.u32 %s142, 1
          %s496 = smul.addr %s495, 8
          %s497 = scalar_lea.vmem [#allocation8], %s496
          %498 = dma.done %s494, 128
        $region64: #{tpu_custom_call.1} parent=59 // pred_fallthru
          _
      $region60: #{tpu_custom_call.1} parent=5 // pred_fallthru
        _
    $region6: #{tpu_custom_call.1} parent=1 // loop_footer
      %s22 = sadd.s32 1, %s18
    $region7: #{tpu_custom_call.1} parent=1 // loop_footer_branch
      %17 = sbr.rel target = $region3
    $region8: #{tpu_custom_call.1} parent=1 // loop_exit
      _
    %499 = vsyncpa [#allocation3], 1
    %s500 = scalar_lea.sflag [#allocation3], 1
    %501 = vsyncpa %s500, 1
    %502 = vsyncpa [#allocation6], 1
    %503 = vsyncpa [#allocation4], 1
    %s504 = scalar_lea.sflag [#allocation4], 1
    %505 = vsyncpa %s504, 1

</llo_original>
